<compile_context>
chip_gen: v7x
topology: tpu7x:2x2x1
jax: 0.10.0
libtpu: 0.0.40
codegen_flags: <defaults>
</compile_context>

<pallas_src>
import jax
import jax.numpy as jnp
from jax import lax
from jax.experimental import pallas as pl
from jax.experimental.pallas import tpu as pltpu


# --------------------------------------------------------------------------
# Fast path: one fused kernel per (Bt, C, HW) block
# --------------------------------------------------------------------------
def _make_fused_kernel(hw_true):
    inv_hw = 1.0 / float(hw_true)

    def kernel(x_ref, w1_ref, b1_ref, w2_ref, b2_ref, o_ref):
        x = x_ref[...]                                        # (Bt, C, HW), input dtype
        bt = x.shape[0]

        # Global spatial pools (lane reductions).  Sum accumulates in f32;
        # max is exact in the input dtype, then cast.
        avg_p = jnp.sum(x, axis=2, dtype=jnp.float32) * inv_hw          # (Bt, C)
        max_p = jnp.max(x, axis=2).astype(jnp.float32)                  # (Bt, C)

        # Fused shared MLP over stacked [avg; max].  Biases are added to both
        # rows on purpose: the reference computes mlp(avg)+mlp(max), each of
        # which includes the bias.
        p = jnp.concatenate([avg_p, max_p], axis=0)                     # (2*Bt, C)
        h = jnp.dot(p, w1_ref[...], preferred_element_type=jnp.float32) + b1_ref[...]
        h = jnp.maximum(h, 0.0)
        att = jnp.dot(h, w2_ref[...], preferred_element_type=jnp.float32) + b2_ref[...]
        scale = jax.nn.sigmoid(att[:bt] + att[bt:])                     # (Bt, C)

        # Rescale in the input dtype (no full-block f32 temporary).
        o_ref[...] = (x * scale.astype(x.dtype)[:, :, None]).astype(o_ref.dtype)

    return kernel


def _channel_gate_fused(x_flat, w1, b1_2d, w2, b2_2d, Bt, vmem_limit):
    B, C, HW = x_flat.shape
    Cr = w1.shape[1]
    kernel = _make_fused_kernel(HW)
    return pl.pallas_call(
        kernel,
        out_shape=jax.ShapeDtypeStruct((B, C, HW), x_flat.dtype),
        grid_spec=pltpu.PrefetchScalarGridSpec(
            num_scalar_prefetch=0,
            grid=(B // Bt,),
            in_specs=[
                # Last two block dims equal the full (C, HW) extents -> legal
                # without any padding or divisibility requirement.
                pl.BlockSpec((Bt, C, HW), lambda b: (b, 0, 0)),
                # Weights: constant block index -> DMA'd once, kept resident.
                pl.BlockSpec((C, Cr), lambda b: (0, 0)),
                pl.BlockSpec((1, Cr), lambda b: (0, 0)),
                pl.BlockSpec((Cr, C), lambda b: (0, 0)),
                pl.BlockSpec((1, C), lambda b: (0, 0)),
            ],
            out_specs=pl.BlockSpec((Bt, C, HW), lambda b: (b, 0, 0)),
        ),
        compiler_params=pltpu.CompilerParams(
            dimension_semantics=("parallel",),
            vmem_limit_bytes=vmem_limit,
        ),
    )(x_flat, w1, b1_2d, w2, b2_2d)


# --------------------------------------------------------------------------
# Large path: HW split over a trailing "arbitrary" axis (pool pass + scale pass)
# --------------------------------------------------------------------------
def _make_pool_kernel(hw_true, chunk):
    inv_hw = 1.0 / float(hw_true)
    need_mask = (hw_true % chunk) != 0

    def kernel(x_ref, avg_ref, max_ref):
        k = pl.program_id(1)

        @pl.when(k == 0)
        def _():
            avg_ref[...] = jnp.zeros_like(avg_ref)
            max_ref[...] = jnp.full(max_ref.shape, -jnp.inf, max_ref.dtype)

        x = x_ref[...]                                        # (1, C, chunk)
        if need_mask:
            # Only the tail chunk has out-of-bounds lanes; mask them so the
            # sum sees 0 and the max sees -inf.
            lane = lax.broadcasted_iota(jnp.int32, x.shape, 2) + k * chunk
            valid = lane < hw_true
            xs = jnp.where(valid, x, jnp.zeros_like(x))
            xm = jnp.where(valid, x, jnp.full_like(x, -jnp.inf))
        else:
            xs, xm = x, x

        avg_ref[...] += jnp.sum(xs, axis=2, dtype=jnp.float32)[:, None, :]
        max_ref[...] = jnp.maximum(
            max_ref[...], jnp.max(xm, axis=2).astype(jnp.float32)[:, None, :])

        @pl.when(k == pl.num_programs(1) - 1)
        def _():
            avg_ref[...] = avg_ref[...] * inv_hw

    return kernel


def _scale_kernel(x_ref, s_ref, o_ref):
    x = x_ref[...]                                            # (1, C, chunk)
    s = s_ref[...].astype(x.dtype)                            # (1, C, 1)
    o_ref[...] = (x * s).astype(o_ref.dtype)


def _channel_gate_split(x_flat, w1, b1_2d, w2, b2_2d, max_block_bytes):
    B, C, HW = x_flat.shape
    itemsize = jnp.dtype(x_flat.dtype).itemsize

    chunk = max(128, (max_block_bytes // (C * itemsize)) // 128 * 128)
    chunk = min(chunk, ((HW + 127) // 128) * 128)
    K = -(-HW // chunk)
    chunk_bytes = C * chunk * itemsize
    scoped_cap = _scoped_vmem_cap()
    vmem_limit = int(min(scoped_cap, max(8 << 20, 6 * chunk_bytes + (2 << 20))))

    # Pass 1: pooled stats per (B, C) with resident accumulators over HW chunks.
    avg_p, max_p = pl.pallas_call(
        _make_pool_kernel(HW, chunk),
        out_shape=(jax.ShapeDtypeStruct((B, 1, C), jnp.float32),
                   jax.ShapeDtypeStruct((B, 1, C), jnp.float32)),
        grid_spec=pltpu.PrefetchScalarGridSpec(
            num_scalar_prefetch=0,
            grid=(B, K),
            in_specs=[pl.BlockSpec((1, C, chunk), lambda b, k: (b, 0, k))],
            out_specs=[pl.BlockSpec((1, 1, C), lambda b, k: (b, 0, 0)),
                       pl.BlockSpec((1, 1, C), lambda b, k: (b, 0, 0))],
        ),
        compiler_params=pltpu.CompilerParams(
            dimension_semantics=("parallel", "arbitrary"),
            vmem_limit_bytes=vmem_limit,
        ),
    )(x_flat)

    # Tiny shared MLP + sigmoid on pooled stats (FLOP-negligible; plain XLA).
    def mlp(p):
        return jnp.maximum(p @ w1 + b1_2d, 0.0) @ w2 + b2_2d

    scale = jax.nn.sigmoid(mlp(avg_p[:, 0, :]) + mlp(max_p[:, 0, :]))
    scale3 = scale.astype(jnp.float32)[:, :, None]            # (B, C, 1)

    # Pass 2: stream HW chunks again and rescale.  OOB lanes of the tail
    # chunk are never written back, so no masking is needed here.
    out = pl.pallas_call(
        _scale_kernel,
        out_shape=jax.ShapeDtypeStruct((B, C, HW), x_flat.dtype),
        grid_spec=pltpu.PrefetchScalarGridSpec(
            num_scalar_prefetch=0,
            grid=(B, K),
            in_specs=[pl.BlockSpec((1, C, chunk), lambda b, k: (b, 0, k)),
                      pl.BlockSpec((1, C, 1), lambda b, k: (b, 0, 0))],
            out_specs=pl.BlockSpec((1, C, chunk), lambda b, k: (b, 0, k)),
        ),
        compiler_params=pltpu.CompilerParams(
            dimension_semantics=("parallel", "parallel"),
            vmem_limit_bytes=vmem_limit,
        ),
    )(x_flat, scale3)
    return out


# --------------------------------------------------------------------------
# Wrapper
# --------------------------------------------------------------------------
def _scoped_vmem_cap():
    """Generation-aware scoped VMEM cap: ~96 MiB on v5e/v6e (128 MiB physical),
    ~48 MiB on v7x (64 MiB physical)."""
    try:
        cap = int(pltpu.get_tpu_info().vmem_capacity_bytes)
    except Exception:
        cap = 128 << 20
    return max(16 << 20, min(cap - (16 << 20), 96 << 20))


def _pick_batch_tile(B, row_bytes, budget_bytes):
    """Largest divisor of B whose (Bt, C, HW) block fits the budget.
    Prefers >= 2 grid steps (input DMA of step i+1 overlaps output write of
    step i; feeds v7x's 2nd TensorCore) and an even step count when it does
    not cost more than 2x in block size.  Returns 0 if nothing fits."""
    divisors = [d for d in range(1, B + 1) if B % d == 0]
    fitting = [d for d in divisors if d * row_bytes <= budget_bytes]
    if not fitting:
        return 0
    multi = [d for d in fitting if B // d >= 2] or fitting
    best = max(multi)
    even = [d for d in multi if (B // d) % 2 == 0 and d * 2 >= best]
    if even:
        best = max(even)
    return best


def channel_gate(x_nchw, w1, b1, w2, b2, *, max_block_bytes=None):
    """x_nchw: (B, C, H, W).  Weights follow nn.Linear semantics stored as
    (in, out), so the kernel computes y = p @ W + b."""
    B, C, H, W = x_nchw.shape
    HW = H * W
    Cr = w1.shape[1]

    x_flat = x_nchw.reshape(B, C, HW)          # no padding; full-extent block dims
    b1_2d = b1.reshape(1, Cr)
    b2_2d = b2.reshape(1, C)

    itemsize = jnp.dtype(x_flat.dtype).itemsize
    row_bytes = C * HW * itemsize
    weight_bytes = (int(w1.size) + int(w2.size) + Cr + C) * 4
    scoped_cap = _scoped_vmem_cap()

    if max_block_bytes is None:
        # in + out double-buffered (4 blocks) plus ~1 block of temporaries.
        max_block_bytes = max(1 << 20,
                              (scoped_cap - 2 * weight_bytes - (2 << 20)) // 5)

    Bt = _pick_batch_tile(B, row_bytes, max_block_bytes)
    if Bt == 0:
        out_flat = _channel_gate_split(x_flat, w1, b1_2d, w2, b2_2d,
                                       max_block_bytes)
        return out_flat.reshape(B, C, H, W)

    block_bytes = Bt * row_bytes
    vmem_limit = int(min(scoped_cap,
                         max(16 << 20,
                             5 * block_bytes + 2 * weight_bytes + (2 << 20))))

    out_flat = _channel_gate_fused(x_flat, w1, b1_2d, w2, b2_2d, Bt, vmem_limit)
    return out_flat.reshape(B, C, H, W)


def channel_gate_ref(x, w1, b1, w2, b2):
    """Pure-JAX reference mirroring the PyTorch forward (pool_types=('avg','max'))."""
    avg_p = jnp.mean(x, axis=(2, 3))
    max_p = jnp.max(x, axis=(2, 3))

    def mlp(p):
        h = jnp.maximum(p @ w1 + b1, 0.0)
        return h @ w2 + b2

    att = mlp(avg_p) + mlp(max_p)
    scale = jax.nn.sigmoid(att)[:, :, None, None]
    return x * scale


if __name__ == "__main__":
    key = jax.random.PRNGKey(0)
    kx, kw1, kb1, kw2, kb2, kx2 = jax.random.split(key, 6)

    # Shapes consistent with ChannelGate(gate_channels=32, reduction_ratio=16)
    B, C, H, W = 2, 32, 8, 8
    RED = 16
    Cr = C // RED                                   # hidden = 2

    x = jax.random.normal(kx, (B, C, H, W), dtype=jnp.float32)
    # nn.Linear(C, Cr) then nn.Linear(Cr, C), stored as (in, out) so p @ W + b.
    w1 = jax.random.normal(kw1, (C, Cr), dtype=jnp.float32) * 0.1
    b1 = jax.random.normal(kb1, (Cr,), dtype=jnp.float32) * 0.1
    w2 = jax.random.normal(kw2, (Cr, C), dtype=jnp.float32) * 0.1
    b2 = jax.random.normal(kb2, (C,), dtype=jnp.float32) * 0.1

    # Fast fused path (HW = 64, not a multiple of 128 -> exercises
    # full-extent last-dim blocks with no padding).
    out = jax.block_until_ready(channel_gate(x, w1, b1, w2, b2))
    ref = channel_gate_ref(x, w1, b1, w2, b2)
    assert out.shape == (B, C, H, W)
    assert jnp.allclose(out, ref, atol=1e-5, rtol=1e-5)

    # HW-split (two-pass) path: force a tiny per-block budget so the wrapper
    # takes the chunked route, with a ragged tail chunk (HW=400, chunk=128).
    H2, W2 = 20, 20
    x2 = jax.random.normal(kx2, (B, C, H2, W2), dtype=jnp.float32)
    out2 = jax.block_until_ready(
        channel_gate(x2, w1, b1, w2, b2, max_block_bytes=20000))
    ref2 = channel_gate_ref(x2, w1, b1, w2, b2)
    assert out2.shape == (B, C, H2, W2)
    assert jnp.allclose(out2, ref2, atol=1e-5, rtol=1e-5)

    print("KERNEL_OK")
</pallas_src>

<mosaic_0001>
module attributes {stable_mosaic.version = 11 : i64} {
  func.func @kernel(%arg0: i32, %arg1: memref<1x32x64xf32, #tpu.memory_space<vmem>>, %arg2: memref<32x2xf32, #tpu.memory_space<vmem>>, %arg3: memref<1x2xf32, #tpu.memory_space<vmem>>, %arg4: memref<2x32xf32, #tpu.memory_space<vmem>>, %arg5: memref<1x32xf32, #tpu.memory_space<vmem>>, %arg6: memref<1x32x64xf32, #tpu.memory_space<vmem>>) attributes {dimension_semantics = [#tpu.dimension_semantics<parallel>], iteration_bounds = array<i64: 2>, scalar_prefetch = 0 : i64, scratch_operands = 0 : i64, tpu.core_type = #tpu.core_type<tc>, window_params = [{transform_indices = @transform_0, window_bounds = array<i64: 1, 32, 64>}, {pipeline_mode = #tpu.pipeline_mode<synchronous>, transform_indices = @transform_1, window_bounds = array<i64: 32, 2>}, {pipeline_mode = #tpu.pipeline_mode<synchronous>, transform_indices = @transform_2, window_bounds = array<i64: 1, 2>}, {pipeline_mode = #tpu.pipeline_mode<synchronous>, transform_indices = @transform_3, window_bounds = array<i64: 2, 32>}, {pipeline_mode = #tpu.pipeline_mode<synchronous>, transform_indices = @transform_4, window_bounds = array<i64: 1, 32>}, {transform_indices = @transform_5, window_bounds = array<i64: 1, 32, 64>}]} {
    %c0 = arith.constant 0 : index
    %c0_0 = arith.constant 0 : index
    %c0_1 = arith.constant 0 : index
    %0 = vector.load %arg1[%c0, %c0_0, %c0_1] : memref<1x32x64xf32, #tpu.memory_space<vmem>>, vector<1x32x64xf32>
    %cst = arith.constant dense<0.000000e+00> : vector<1x32xf32>
    %1 = vector.multi_reduction <add>, %0, %cst [2] : vector<1x32x64xf32> to vector<1x32xf32>
    %cst_2 = arith.constant 1.562500e-02 : f32
    %2 = vector.broadcast %cst_2 : f32 to vector<1x32xf32>
    %3 = arith.mulf %1, %2 : vector<1x32xf32>
    %cst_3 = arith.constant dense<0xFF800000> : vector<1x32xf32>
    %4 = vector.multi_reduction <maximumf>, %0, %cst_3 [2] : vector<1x32x64xf32> to vector<1x32xf32>
    %5 = tpu.concatenate %3, %4 in 0 : vector<1x32xf32>, vector<1x32xf32> -> vector<2x32xf32>
    %c0_4 = arith.constant 0 : index
    %c0_5 = arith.constant 0 : index
    %6 = vector.load %arg2[%c0_4, %c0_5] : memref<32x2xf32, #tpu.memory_space<vmem>>, vector<32x2xf32>
    %cst_6 = arith.constant dense<0.000000e+00> : vector<2x2xf32>
    %7 = tpu.matmul %5, %6, %cst_6 {dimension_numbers = #tpu.dot_dimension_numbers<[1], [0], [0], [1], [0, 0, 1, 1], [], []>} : vector<2x32xf32>, vector<32x2xf32>, vector<2x2xf32> -> vector<2x2xf32>
    %c0_7 = arith.constant 0 : index
    %c0_8 = arith.constant 0 : index
    %8 = vector.load %arg3[%c0_7, %c0_8] : memref<1x2xf32, #tpu.memory_space<vmem>>, vector<1x2xf32>
    %9 = vector.broadcast %8 : vector<1x2xf32> to vector<2x2xf32>
    %10 = arith.addf %7, %9 : vector<2x2xf32>
    %cst_9 = arith.constant 0.000000e+00 : f32
    %11 = vector.broadcast %cst_9 : f32 to vector<2x2xf32>
    %12 = arith.maximumf %10, %11 : vector<2x2xf32>
    %c0_10 = arith.constant 0 : index
    %c0_11 = arith.constant 0 : index
    %13 = vector.load %arg4[%c0_10, %c0_11] : memref<2x32xf32, #tpu.memory_space<vmem>>, vector<2x32xf32>
    %cst_12 = arith.constant dense<0.000000e+00> : vector<2x32xf32>
    %14 = tpu.matmul %12, %13, %cst_12 {dimension_numbers = #tpu.dot_dimension_numbers<[1], [0], [0], [1], [0, 0, 1, 1], [], []>} : vector<2x2xf32>, vector<2x32xf32>, vector<2x32xf32> -> vector<2x32xf32>
    %c0_13 = arith.constant 0 : index
    %c0_14 = arith.constant 0 : index
    %15 = vector.load %arg5[%c0_13, %c0_14] : memref<1x32xf32, #tpu.memory_space<vmem>>, vector<1x32xf32>
    %16 = vector.broadcast %15 : vector<1x32xf32> to vector<2x32xf32>
    %17 = arith.addf %14, %16 : vector<2x32xf32>
    %18 = vector.extract_strided_slice %17 {offsets = [0, 0], sizes = [1, 32], strides = [1, 1]} : vector<2x32xf32> to vector<1x32xf32>
    %19 = vector.extract_strided_slice %17 {offsets = [1, 0], sizes = [1, 32], strides = [1, 1]} : vector<2x32xf32> to vector<1x32xf32>
    %20 = arith.addf %18, %19 : vector<1x32xf32>
    %21 = arith.negf %20 : vector<1x32xf32>
    %22 = math.exp %21 : vector<1x32xf32>
    %cst_15 = arith.constant 1.000000e+00 : f32
    %23 = vector.broadcast %cst_15 : f32 to vector<1x32xf32>
    %24 = arith.addf %23, %22 : vector<1x32xf32>
    %25 = arith.divf %23, %24 : vector<1x32xf32>
    %26 = vector.shape_cast %25 : vector<1x32xf32> to vector<1x32x1xf32>
    %27 = vector.broadcast %26 : vector<1x32x1xf32> to vector<1x32x64xf32>
    %28 = arith.mulf %0, %27 : vector<1x32x64xf32>
    %c0_16 = arith.constant 0 : index
    %c0_17 = arith.constant 0 : index
    %c0_18 = arith.constant 0 : index
    %29 = vector.load %arg6[%c0_16, %c0_17, %c0_18] : memref<1x32x64xf32, #tpu.memory_space<vmem>>, vector<1x32x64xf32>
    tpu.vector_store %arg6[%c0_16, %c0_17, %c0_18], %28 {strides = array<i32>} : memref<1x32x64xf32, #tpu.memory_space<vmem>>, vector<1x32x64xf32>,
    return
  }
  func.func @transform_0(%arg0: i32) -> (i32, i32, i32) {
    %c0_i32 = arith.constant 0 : i32
    %c0_i32_0 = arith.constant 0 : i32
    %c0_i32_1 = arith.constant 0 : i32
    return %arg0, %c0_i32, %c0_i32_0 : i32, i32, i32
  }
  func.func @transform_1(%arg0: i32) -> (i32, i32) {
    %c0_i32 = arith.constant 0 : i32
    %c0_i32_0 = arith.constant 0 : i32
    %c0_i32_1 = arith.constant 0 : i32
    return %c0_i32, %c0_i32_0 : i32, i32
  }
  func.func @transform_2(%arg0: i32) -> (i32, i32) {
    %c0_i32 = arith.constant 0 : i32
    %c0_i32_0 = arith.constant 0 : i32
    %c0_i32_1 = arith.constant 0 : i32
    return %c0_i32, %c0_i32_0 : i32, i32
  }
  func.func @transform_3(%arg0: i32) -> (i32, i32) {
    %c0_i32 = arith.constant 0 : i32
    %c0_i32_0 = arith.constant 0 : i32
    %c0_i32_1 = arith.constant 0 : i32
    return %c0_i32, %c0_i32_0 : i32, i32
  }
  func.func @transform_4(%arg0: i32) -> (i32, i32) {
    %c0_i32 = arith.constant 0 : i32
    %c0_i32_0 = arith.constant 0 : i32
    %c0_i32_1 = arith.constant 0 : i32
    return %c0_i32, %c0_i32_0 : i32, i32
  }
  func.func @transform_5(%arg0: i32) -> (i32, i32, i32) {
    %c0_i32 = arith.constant 0 : i32
    %c0_i32_0 = arith.constant 0 : i32
    %c0_i32_1 = arith.constant 0 : i32
    return %arg0, %c0_i32, %c0_i32_0 : i32, i32, i32
  }
}

</mosaic_0001>

<llo_original>
// kernel: tpu_custom_call.1
$region0: #{tpu_custom_call.1}
  #allocation0 [shape = 'u32[]', space=smem, size = 0x4, offset = 0x4, fixed_abs, tag = 'smem constant byte address 0x4 - core index']
  #allocation1 [shape = 'u32[144,128]{1,0:T(1,128)}', space=vmem, size = 0x12000, scoped, tag = 'internal scratch']
  %s0 = inlined_call_operand.hbm [shape: f32[2,32,64], index: 0, kind: input, shape index: {}]
  %s1 = inlined_call_operand.vmem [shape: f32[32,2], index: 1, kind: input, shape index: {}]
  %s2 = inlined_call_operand.vmem [shape: f32[1,2], index: 2, kind: input, shape index: {}]
  %s3 = inlined_call_operand.vmem [shape: f32[2,32], index: 3, kind: input, shape index: {}]
  %s4 = inlined_call_operand.vmem [shape: f32[1,32], index: 4, kind: input, shape index: {}]
  %s5 = inlined_call_operand.hbm [shape: f32[2,32,64], index: 5, kind: output, shape index: {}]
  %s6 = sld [smem:[#allocation0]]
  $region57: #{tpu_custom_call.1} parent=0
    _
  %s8 = ssub.s32 1, %s6
  %s9 = scalar_select 0, %s8, %s6
  $region1: #{tpu_custom_call.1} parent=0
    #allocation2 [shape = 'u8[32768]{0}', space=vmem, size = 0x8000, scoped, tag = 'input window, operand 0']
    #allocation3 [shape = 's32[2]{0}', space=sflag, size = 0x8, scoped, tag = 'scoped memory for tpu_custom_call.1']
    #allocation4 [shape = 's32[2]{0}', space=sflag, size = 0x8, scoped, tag = 'scoped memory for tpu_custom_call.1']
    #allocation5 [shape = 'u8[32768]{0}', space=vmem, size = 0x8000, scoped, tag = 'output window, operand 0']
    %10 = vsyncpa [#allocation3], 0
    %s11 = scalar_lea.sflag [#allocation3], 1
    %12 = vsyncpa %s11, 0
    %13 = vsyncpa [#allocation4], 0
    %s14 = scalar_lea.sflag [#allocation4], 1
    %15 = vsyncpa %s14, 0
    loop: start=0, step=1, limit=4
    $region2: #{tpu_custom_call.1} parent=1 // loop_pre_header
      _
    $region3: #{tpu_custom_call.1} parent=1 // loop_header
      %s17 = sphi 0, %s21
      %p18 = scmp.ge.s32.totalorder %s17, 4
      %s27 = sphi 0, %s29
      %s30 = sphi 0, %s27
      %s31 = sphi 0, %s30
      %s47 = sphi 0, %s31
      %s51 = sphi 0, %s51
      %s53 = sphi 0, %s51
      %s54 = sphi 0, %s53
      %s68 = sphi 0, %s54
      %s72 = sphi 0, %s72
      %s74 = sphi 0, %s72
      %s75 = sphi 0, %s74
      %s89 = sphi 0, %s75
      %s93 = sphi 0, %s93
      %s95 = sphi 0, %s93
      %s96 = sphi 0, %s95
      %s110 = sphi 0, %s96
      %s114 = sphi 0, %s114
      %s116 = sphi 0, %s114
      %s117 = sphi 0, %s116
      %s131 = sphi 0, %s117
      %s137 = sphi 0, %s139
      %s140 = sphi 0, %s137
      %s141 = sphi 0, %s140
      %s157 = sphi 0, %s141
    $region4: #{tpu_custom_call.1} parent=1 // loop_header_branch
      %20 = sbr.rel (%p18) target = $region8
    $region5: #{tpu_custom_call.1} parent=1 // loop_body
      %s22 = ssub.s32 %s17, 1
      %s23 = ssub.s32 %s17, 2
      %s24 = sadd.s32 %s17, 1
      %s25 = ssub.s32 %s17, %s24
      %p26 = scmp.eq.s32.totalorder %s25, 0
      %s28 = sadd.s32 %s27, 1
      %s29 = scalar_select %p26, %s27, %s28
      %p32 = pneg %p26
      %p33 = scmp.eq.s32.totalorder %s17, 1
      %p34 = por %p32, %p33
      %p35 = scmp.ne.s32.totalorder %s27, %s30
      %p36 = scmp.eq.s32.totalorder %s17, 0
      %p37 = por %p35, %p36
      %p38 = scmp.ne.s32.totalorder %s27, %s30
      %p39 = scmp.eq.s32.totalorder %s22, 1
      %p40 = por %p38, %p39
      %p41 = scmp.ne.s32.totalorder %s30, %s31
      %p42 = scmp.eq.s32.totalorder %s22, 0
      %p43 = por %p41, %p42
      %p44 = scmp.ne.s32.totalorder %s30, %s31
      %p45 = scmp.eq.s32.totalorder %s23, 1
      %p46 = por %p44, %p45
      %p48 = scmp.ne.s32.totalorder %s31, %s47
      %p49 = scmp.eq.s32.totalorder %s23, 0
      %p50 = por %p48, %p49
      %s52 = sadd.s32 %s51, 1
      %p55 = scmp.eq.s32.totalorder %s17, 1
      %p56 = scmp.ne.s32.totalorder %s51, %s53
      %p57 = scmp.eq.s32.totalorder %s17, 0
      %p58 = por %p56, %p57
      %p59 = scmp.ne.s32.totalorder %s51, %s53
      %p60 = scmp.eq.s32.totalorder %s22, 1
      %p61 = por %p59, %p60
      %p62 = scmp.ne.s32.totalorder %s53, %s54
      %p63 = scmp.eq.s32.totalorder %s22, 0
      %p64 = por %p62, %p63
      %p65 = scmp.ne.s32.totalorder %s53, %s54
      %p66 = scmp.eq.s32.totalorder %s23, 1
      %p67 = por %p65, %p66
      %p69 = scmp.ne.s32.totalorder %s54, %s68
      %p70 = scmp.eq.s32.totalorder %s23, 0
      %p71 = por %p69, %p70
      %s73 = sadd.s32 %s72, 1
      %p76 = scmp.eq.s32.totalorder %s17, 1
      %p77 = scmp.ne.s32.totalorder %s72, %s74
      %p78 = scmp.eq.s32.totalorder %s17, 0
      %p79 = por %p77, %p78
      %p80 = scmp.ne.s32.totalorder %s72, %s74
      %p81 = scmp.eq.s32.totalorder %s22, 1
      %p82 = por %p80, %p81
      %p83 = scmp.ne.s32.totalorder %s74, %s75
      %p84 = scmp.eq.s32.totalorder %s22, 0
      %p85 = por %p83, %p84
      %p86 = scmp.ne.s32.totalorder %s74, %s75
      %p87 = scmp.eq.s32.totalorder %s23, 1
      %p88 = por %p86, %p87
      %p90 = scmp.ne.s32.totalorder %s75, %s89
      %p91 = scmp.eq.s32.totalorder %s23, 0
      %p92 = por %p90, %p91
      %s94 = sadd.s32 %s93, 1
      %p97 = scmp.eq.s32.totalorder %s17, 1
      %p98 = scmp.ne.s32.totalorder %s93, %s95
      %p99 = scmp.eq.s32.totalorder %s17, 0
      %p100 = por %p98, %p99
      %p101 = scmp.ne.s32.totalorder %s93, %s95
      %p102 = scmp.eq.s32.totalorder %s22, 1
      %p103 = por %p101, %p102
      %p104 = scmp.ne.s32.totalorder %s95, %s96
      %p105 = scmp.eq.s32.totalorder %s22, 0
      %p106 = por %p104, %p105
      %p107 = scmp.ne.s32.totalorder %s95, %s96
      %p108 = scmp.eq.s32.totalorder %s23, 1
      %p109 = por %p107, %p108
      %p111 = scmp.ne.s32.totalorder %s96, %s110
      %p112 = scmp.eq.s32.totalorder %s23, 0
      %p113 = por %p111, %p112
      %s115 = sadd.s32 %s114, 1
      %p118 = scmp.eq.s32.totalorder %s17, 1
      %p119 = scmp.ne.s32.totalorder %s114, %s116
      %p120 = scmp.eq.s32.totalorder %s17, 0
      %p121 = por %p119, %p120
      %p122 = scmp.ne.s32.totalorder %s114, %s116
      %p123 = scmp.eq.s32.totalorder %s22, 1
      %p124 = por %p122, %p123
      %p125 = scmp.ne.s32.totalorder %s116, %s117
      %p126 = scmp.eq.s32.totalorder %s22, 0
      %p127 = por %p125, %p126
      %p128 = scmp.ne.s32.totalorder %s116, %s117
      %p129 = scmp.eq.s32.totalorder %s23, 1
      %p130 = por %p128, %p129
      %p132 = scmp.ne.s32.totalorder %s117, %s131
      %p133 = scmp.eq.s32.totalorder %s23, 0
      %p134 = por %p132, %p133
      %s135 = ssub.s32 %s17, %s24
      %p136 = scmp.eq.s32.totalorder %s135, 0
      %s138 = sadd.s32 %s137, 1
      %s139 = scalar_select %p136, %s137, %s138
      %p142 = pneg %p136
      %p143 = scmp.eq.s32.totalorder %s17, 1
      %p144 = por %p142, %p143
      %p145 = scmp.ne.s32.totalorder %s137, %s140
      %p146 = scmp.eq.s32.totalorder %s17, 0
      %p147 = por %p145, %p146
      %p148 = scmp.ne.s32.totalorder %s137, %s140
      %p149 = scmp.eq.s32.totalorder %s22, 1
      %p150 = por %p148, %p149
      %p151 = scmp.ne.s32.totalorder %s140, %s141
      %p152 = scmp.eq.s32.totalorder %s22, 0
      %p153 = por %p151, %p152
      %p154 = scmp.ne.s32.totalorder %s140, %s141
      %p155 = scmp.eq.s32.totalorder %s23, 1
      %p156 = por %p154, %p155
      %p158 = scmp.ne.s32.totalorder %s141, %s157
      %p159 = scmp.eq.s32.totalorder %s23, 0
      %p160 = por %p158, %p159
      %p161 = scmp.le.s32.totalorder 1, %s17
      %p162 = scmp.lt.s32.totalorder %s17, 3
      %p163 = pnand %p161, %p162
      %p164 = pneg %p163
      // Predicated region
      $region9: #{tpu_custom_call.1} parent=5 // pred_check
        _
      $region10: #{tpu_custom_call.1} parent=5 // pred_check_branch
        %166 = sbr.rel (%p163) target = $region12
      $region11: #{tpu_custom_call.1} parent=5 // pred_region
        %s167 = ssub.s32 %s17, 1
        // Predicated region
        $region13: #{tpu_custom_call.1} parent=11 // pred_check
          %p168 = pneg %p64
        $region14: #{tpu_custom_call.1} parent=11 // pred_check_branch
          %170 = sbr.rel (%p168) target = $region16
        $region15: #{tpu_custom_call.1} parent=11 // pred_region
          _
        $region16: #{tpu_custom_call.1} parent=11 // pred_fallthru
          _
        // Predicated region
        $region17: #{tpu_custom_call.1} parent=11 // pred_check
          %p171 = pneg %p85
        $region18: #{tpu_custom_call.1} parent=11 // pred_check_branch
          %173 = sbr.rel (%p171) target = $region20
        $region19: #{tpu_custom_call.1} parent=11 // pred_region
          _
        $region20: #{tpu_custom_call.1} parent=11 // pred_fallthru
          _
        // Predicated region
        $region21: #{tpu_custom_call.1} parent=11 // pred_check
          %p174 = pneg %p106
        $region22: #{tpu_custom_call.1} parent=11 // pred_check_branch
          %176 = sbr.rel (%p174) target = $region24
        $region23: #{tpu_custom_call.1} parent=11 // pred_region
          _
        $region24: #{tpu_custom_call.1} parent=11 // pred_fallthru
          _
        // Predicated region
        $region25: #{tpu_custom_call.1} parent=11 // pred_check
          %p177 = pneg %p127
        $region26: #{tpu_custom_call.1} parent=11 // pred_check_branch
          %179 = sbr.rel (%p177) target = $region28
        $region27: #{tpu_custom_call.1} parent=11 // pred_region
          _
        $region28: #{tpu_custom_call.1} parent=11 // pred_fallthru
          _
      $region12: #{tpu_custom_call.1} parent=5 // pred_fallthru
        _
      %p180 = scmp.lt.s32.totalorder %s17, 2
      // Predicated region
      $region29: #{tpu_custom_call.1} parent=5 // pred_check
        %p181 = pneg %p180
      $region30: #{tpu_custom_call.1} parent=5 // pred_check_branch
        %183 = sbr.rel (%p181) target = $region32
      $region31: #{tpu_custom_call.1} parent=5 // pred_region
        // Predicated region
        $region33: #{tpu_custom_call.1} parent=31 // pred_check
          %p184 = pneg %p37
        $region34: #{tpu_custom_call.1} parent=31 // pred_check_branch
          %186 = sbr.rel (%p184) target = $region36
        $region35: #{tpu_custom_call.1} parent=31 // pred_region
          %s187 = sand.u32 %s27, 1
          %s188 = scalar_lea.sflag [#allocation3], %s187
          %s189 = sand.u32 %s27, 1
          %s190 = smul.addr %s189, 32
          %s191 = scalar_lea.vmem [#allocation2], %s190
          %s193 = ssub.s32 512, 512
          %194 = vsyncadd %s188, %s193
          %s195 = smul.addr %s17, 4
          %s196 = smul.addr %s195, 128
          %s197 = scalar_lea.hbm %s0, %s196
          %s198 = sshll.u32 %s191, 4
          %s199 = int_to_ptr.vmem [resolvable:$true] %s198
          %204 = dma.hbm_to_vmem [thread:$0]  %s197, 512, %s199, %s188, 128, 128, 8
        $region36: #{tpu_custom_call.1} parent=31 // pred_fallthru
          _
      $region32: #{tpu_custom_call.1} parent=5 // pred_fallthru
        _
      %p205 = scmp.le.s32.totalorder 1, %s17
      %p206 = scmp.lt.s32.totalorder %s17, 3
      %p207 = pnand %p205, %p206
      %p208 = pneg %p207
      // Predicated region
      $region37: #{tpu_custom_call.1} parent=5 // pred_check
        _
      $region38: #{tpu_custom_call.1} parent=5 // pred_check_branch
        %210 = sbr.rel (%p207) target = $region40
      $region39: #{tpu_custom_call.1} parent=5 // pred_region
        %s211 = ssub.s32 %s17, 1
        %s212 = sand.u32 %s30, 1
        %s213 = scalar_lea.sflag [#allocation3], %s212
        %s214 = sand.u32 %s30, 1
        %s215 = smul.addr %s214, 32
        %s216 = scalar_lea.vmem [#allocation2], %s215
        // Predicated region
        $region41: #{tpu_custom_call.1} parent=39 // pred_check
          %p217 = pneg %p43
        $region42: #{tpu_custom_call.1} parent=39 // pred_check_branch
          %219 = sbr.rel (%p217) target = $region44
        $region43: #{tpu_custom_call.1} parent=39 // pred_region
          %220 = dma.done %s213, 512
        $region44: #{tpu_custom_call.1} parent=39 // pred_fallthru
          _
        %s221 = sand.u32 %s30, 1
        %s222 = scalar_lea.sflag [#allocation3], %s221
        %s223 = sand.u32 %s30, 1
        %s224 = smul.addr %s223, 32
        %s225 = scalar_lea.vmem [#allocation2], %s224
        %p226 = pneg %p43
        %p227 = pneg %p40
        %p228 = pneg %p64
        %p229 = pneg %p61
        %p230 = pneg %p85
        %p231 = pneg %p82
        %p232 = pneg %p106
        %p233 = pneg %p103
        %p234 = pneg %p127
        %p235 = pneg %p124
        %p236 = pneg %p153
        %p237 = pneg %p150
        %s238 = sand.u32 %s140, 1
        %s239 = scalar_lea.sflag [#allocation4], %s238
        %s240 = sand.u32 %s140, 1
        %s241 = smul.addr %s240, 32
        %s242 = scalar_lea.vmem [#allocation5], %s241
        %v243 = vld [vmem:[%s216] sm:$0xff]
        %v244 = vld [vmem:[%s216 + $0x8] sm:$0xff]
        %v245 = vld [vmem:[%s216 + $0x10] sm:$0xff]
        %v246 = vld [vmem:[%s216 + $0x18] sm:$0xff]
        %vm247 = vcmask 523264
        %v248 = vsel %vm247, %v243, 0.0
        %249 = vadd.xlane.f32.xlu0 %v248
        %v250 = vpop.xlane.xlu0 %249
        %v251 = vsel %vm247, %v244, 0.0
        %252 = vadd.xlane.f32.xlu0 %v251
        %v253 = vpop.xlane.xlu0 %252
        %v254 = vsel %vm247, %v245, 0.0
        %255 = vadd.xlane.f32.xlu0 %v254
        %v256 = vpop.xlane.xlu0 %255
        %v257 = vsel %vm247, %v246, 0.0
        %258 = vadd.xlane.f32.xlu0 %v257
        %v259 = vpop.xlane.xlu0 %258
        %v260 = vmul.f32 %v250, 0.015625
        %v261 = vmul.f32 %v253, 0.015625
        %v262 = vmul.f32 %v256, 0.015625
        %v263 = vmul.f32 %v259, 0.015625
        %v264 = vsel %vm247, %v243, -inf
        %265 = vmax.xlane.f32.xlu0 %v264
        %v266 = vpop.xlane.xlu0 %265
        %v267 = vsel %vm247, %v244, -inf
        %268 = vmax.xlane.f32.xlu0 %v267
        %v269 = vpop.xlane.xlu0 %268
        %v270 = vsel %vm247, %v245, -inf
        %271 = vmax.xlane.f32.xlu0 %v270
        %v272 = vpop.xlane.xlu0 %271
        %v273 = vsel %vm247, %v246, -inf
        %274 = vmax.xlane.f32.xlu0 %v273
        %v275 = vpop.xlane.xlu0 %274
        %v280 = vlaneseq
        %v281 = vand.u32 %v280, 127
        %v282 = vlaneseq
        %v283 = vshrl.u32 %v282, 7
        %v284 = vsub.s32 %v281, %v283
        %v285 = vrot.slane %v260, %v284
        %v286 = vadd.s32 %v281, 4294967288
        %v287 = vlaneseq
        %v288 = vshrl.u32 %v287, 7
        %v289 = vsub.s32 %v286, %v288
        %v290 = vrot.slane %v261, %v289
        %vm291 = vcmask 130112
        %v292 = vsel %vm291, %v290, %v285
        %v293 = vadd.s32 %v281, 4294967280
        %v294 = vlaneseq
        %v295 = vshrl.u32 %v294, 7
        %v296 = vsub.s32 %v293, %v295
        %v297 = vrot.slane %v262, %v296
        %vm298 = vcmask 195712
        %v299 = vsel %vm298, %v297, %v292
        %v300 = vadd.s32 %v281, 4294967272
        %v301 = vlaneseq
        %v302 = vshrl.u32 %v301, 7
        %v303 = vsub.s32 %v300, %v302
        %v304 = vrot.slane %v263, %v303
        %vm305 = vcmask 261312
        %v306 = vsel %vm305, %v304, %v299
        %v312 = vlaneseq
        %v313 = vshrl.u32 %v312, 7
        %v314 = vsub.s32 %v281, %v313
        %v315 = vrot.slane %v266, %v314
        %v316 = vlaneseq
        %v317 = vshrl.u32 %v316, 7
        %v318 = vsub.s32 %v286, %v317
        %v319 = vrot.slane %v269, %v318
        %v320 = vsel %vm291, %v319, %v315
        %v321 = vlaneseq
        %v322 = vshrl.u32 %v321, 7
        %v323 = vsub.s32 %v293, %v322
        %v324 = vrot.slane %v272, %v323
        %v325 = vsel %vm298, %v324, %v320
        %v326 = vlaneseq
        %v327 = vshrl.u32 %v326, 7
        %v328 = vsub.s32 %v300, %v327
        %v329 = vrot.slane %v275, %v328
        %v330 = vsel %vm305, %v329, %v325
        %vm332 = vcmask 1040384
        %v333 = vsel %vm332, %v306, %v330
        %v334 = vld [vmem:[%s1] sm:$0xff]
        %v335 = vld [vmem:[%s1 + $0x8] sm:$0xff]
        %v336 = vld [vmem:[%s1 + $0x10] sm:$0xff]
        %v337 = vld [vmem:[%s1 + $0x18] sm:$0xff]
        %v338 = vld [vmem:[%s2] sm:$0x1]
        %v340 = vlaneseq
        %v341 = vshrl.u32 %v340, 7
        %v342 = vsub.s32 0, %v341
        %v343 = vrot.slane %v338, %v342
        %vm345 = vcmask 261120
        %v347 = vsel %vm345, %v333, 0
        %349 = vmatprep.subr.mxu0 0.0
        %350 = vmatpush1.msra.mxu0 %v334
        %351 = vmatprep.subr.mxu0 0.0
        %352 = vmatpush1.msra.mxu0 %v335
        %353 = vmatprep.subr.mxu0 0.0
        %354 = vmatpush1.msra.mxu0 %v336
        %355 = vmatprep.subr.mxu0 0.0
        %356 = vmatpush1.msra.mxu0 %v337
        %357 = vmatprep.subr.mxu0 0.0
        %358 = vmatpush1.msra.mxu0 0.0
        %359 = vmatprep.subr.mxu0 0.0
        %360 = vmatpush1.msra.mxu0 0.0
        %361 = vmatprep.subr.mxu0 0.0
        %362 = vmatpush1.msra.mxu0 0.0
        %363 = vmatprep.subr.mxu0 0.0
        %364 = vmatpush1.msra.mxu0 0.0
        %365 = vmatprep.subr.mxu0 0.0
        %366 = vmatpush1.msra.mxu0 0.0
        %367 = vmatprep.subr.mxu0 0.0
        %368 = vmatpush1.msra.mxu0 0.0
        %369 = vmatprep.subr.mxu0 0.0
        %370 = vmatpush1.msra.mxu0 0.0
        %371 = vmatprep.subr.mxu0 0.0
        %372 = vmatpush1.msra.mxu0 0.0
        %373 = vmatprep.subr.mxu0 0.0
        %374 = vmatpush1.msra.mxu0 0.0
        %375 = vmatprep.subr.mxu0 0.0
        %376 = vmatpush1.msra.mxu0 0.0
        %377 = vmatprep.subr.mxu0 0.0
        %378 = vmatpush1.msra.mxu0 0.0
        %379 = vmatprep.subr.mxu0 0.0
        %380 = vmatpush1.msra.mxu0 0.0
        %381 = vmatprep.subr.mxu0 0.0
        %382 = vmatpush1.msra.mxu0 0.0
        %383 = vmatprep.subr.mxu0 0.0
        %384 = vmatpush1.msra.mxu0 0.0
        %385 = vmatprep.subr.mxu0 0.0
        %386 = vmatpush1.msra.mxu0 0.0
        %387 = vmatprep.subr.mxu0 0.0
        %388 = vmatpush1.msra.mxu0 0.0
        %389 = vmatprep.subr.mxu0 0.0
        %390 = vmatpush1.msra.mxu0 0.0
        %391 = vmatprep.subr.mxu0 0.0
        %392 = vmatpush1.msra.mxu0 0.0
        %393 = vmatprep.subr.mxu0 0.0
        %394 = vmatpush1.msra.mxu0 0.0
        %395 = vmatprep.subr.mxu0 0.0
        %396 = vmatpush1.msra.mxu0 0.0
        %397 = vmatprep.subr.mxu0 0.0
        %398 = vmatpush1.msra.mxu0 0.0
        %399 = vmatprep.subr.mxu0 0.0
        %400 = vmatpush1.msra.mxu0 0.0
        %401 = vmatprep.subr.mxu0 0.0
        %402 = vmatpush1.msra.mxu0 0.0
        %403 = vmatprep.subr.mxu0 0.0
        %404 = vmatpush1.msra.mxu0 0.0
        %405 = vmatprep.subr.mxu0 0.0
        %406 = vmatpush1.msra.mxu0 0.0
        %407 = vmatprep.subr.mxu0 0.0
        %408 = vmatpush1.msra.mxu0 0.0
        %409 = vmatprep.subr.mxu0 0.0
        %410 = vmatpush1.msra.mxu0 0.0
        %411 = vmatprep.subr.mxu0 0.0
        %412 = vmatpush1.msra.mxu0 0.0
        %413 = vmatprep.mubr.f32.mxu0 0.0
        %414 = vmatmul.mubr.f32.gmra.mrb[0].mxu0 %v347
        %v415 = vpop.f32.mrb[0].mxu0
        %v416 = vadd.f32 %v343, %v415
        %v417 = vpop.f32.mrb[0].mxu0
        %418 = vdwg.mxu0
        %v419 = vmax.f32 %v416, 0.0
        %v420 = vld [vmem:[%s3] sm:$0x3]
        %v421 = vld [vmem:[%s4] sm:$0x1]
        %v423 = vlaneseq
        %v424 = vshrl.u32 %v423, 7
        %v425 = vsub.s32 0, %v424
        %v426 = vrot.slane %v421, %v425
        %vm428 = vcmask 15360
        %v430 = vsel %vm428, %v419, 0
        %vm432 = vcmask 1041408
        %v434 = vsel %vm432, %v420, 0
        %436 = vmatprep.subr.mxu0 0.0
        %437 = vmatpush1.msra.mxu0 %v434
        %438 = vmatprep.subr.mxu0 0.0
        %439 = vmatpush1.msra.mxu0 0.0
        %440 = vmatprep.subr.mxu0 0.0
        %441 = vmatpush1.msra.mxu0 0.0
        %442 = vmatprep.subr.mxu0 0.0
        %443 = vmatpush1.msra.mxu0 0.0
        %444 = vmatprep.subr.mxu0 0.0
        %445 = vmatpush1.msra.mxu0 0.0
        %446 = vmatprep.subr.mxu0 0.0
        %447 = vmatpush1.msra.mxu0 0.0
        %448 = vmatprep.subr.mxu0 0.0
        %449 = vmatpush1.msra.mxu0 0.0
        %450 = vmatprep.subr.mxu0 0.0
        %451 = vmatpush1.msra.mxu0 0.0
        %452 = vmatprep.subr.mxu0 0.0
        %453 = vmatpush1.msra.mxu0 0.0
        %454 = vmatprep.subr.mxu0 0.0
        %455 = vmatpush1.msra.mxu0 0.0
        %456 = vmatprep.subr.mxu0 0.0
        %457 = vmatpush1.msra.mxu0 0.0
        %458 = vmatprep.subr.mxu0 0.0
        %459 = vmatpush1.msra.mxu0 0.0
        %460 = vmatprep.subr.mxu0 0.0
        %461 = vmatpush1.msra.mxu0 0.0
        %462 = vmatprep.subr.mxu0 0.0
        %463 = vmatpush1.msra.mxu0 0.0
        %464 = vmatprep.subr.mxu0 0.0
        %465 = vmatpush1.msra.mxu0 0.0
        %466 = vmatprep.subr.mxu0 0.0
        %467 = vmatpush1.msra.mxu0 0.0
        %468 = vmatprep.subr.mxu0 0.0
        %469 = vmatpush1.msra.mxu0 0.0
        %470 = vmatprep.subr.mxu0 0.0
        %471 = vmatpush1.msra.mxu0 0.0
        %472 = vmatprep.subr.mxu0 0.0
        %473 = vmatpush1.msra.mxu0 0.0
        %474 = vmatprep.subr.mxu0 0.0
        %475 = vmatpush1.msra.mxu0 0.0
        %476 = vmatprep.subr.mxu0 0.0
        %477 = vmatpush1.msra.mxu0 0.0
        %478 = vmatprep.subr.mxu0 0.0
        %479 = vmatpush1.msra.mxu0 0.0
        %480 = vmatprep.subr.mxu0 0.0
        %481 = vmatpush1.msra.mxu0 0.0
        %482 = vmatprep.subr.mxu0 0.0
        %483 = vmatpush1.msra.mxu0 0.0
        %484 = vmatprep.subr.mxu0 0.0
        %485 = vmatpush1.msra.mxu0 0.0
        %486 = vmatprep.subr.mxu0 0.0
        %487 = vmatpush1.msra.mxu0 0.0
        %488 = vmatprep.subr.mxu0 0.0
        %489 = vmatpush1.msra.mxu0 0.0
        %490 = vmatprep.subr.mxu0 0.0
        %491 = vmatpush1.msra.mxu0 0.0
        %492 = vmatprep.subr.mxu0 0.0
        %493 = vmatpush1.msra.mxu0 0.0
        %494 = vmatprep.subr.mxu0 0.0
        %495 = vmatpush1.msra.mxu0 0.0
        %496 = vmatprep.subr.mxu0 0.0
        %497 = vmatpush1.msra.mxu0 0.0
        %498 = vmatprep.subr.mxu0 0.0
        %499 = vmatpush1.msra.mxu0 0.0
        %500 = vmatprep.mubr.f32.mxu0 0.0
        %501 = vmatmul.mubr.f32.gmra.mrb[0].mxu0 %v430
        %v502 = vpop.f32.mrb[0].mxu0
        %v503 = vadd.f32 %v426, %v502
        %v504 = vpop.f32.mrb[0].mxu0
        %505 = vdwg.mxu0
        %v507 = vrot.slane %v503, 1
        %v509 = vadd.f32 %v503, %v507
        %v510 = vxor.u32 %v509, 2147483648
        %v511 = vmul.f32 %v510, 1.442695
        %v512 = vpow.pop %v511
        %v513 = vadd.f32 %v512, 1.0
        %v514 = vrcp.pop %v513
        %v515 = vmul.f32 1.0, %v514
        %v516 = vlaneseq
        %v517 = vshrl.u32 %v516, 7
        %v518 = vsub.s32 0, %v517
        %v519 = vrot.slane %v515, %v518
        %521 = vbcast.lane.b32.xlu0 %v519, 256
        %v522 = vpop.permute.xlu0 %521
        %s524 = sor.u32 256, 8
        %525 = vbcast.lane.b32.xlu0 %v519, %s524
        %v526 = vpop.permute.xlu0 %525
        %s528 = sor.u32 256, 16
        %529 = vbcast.lane.b32.xlu0 %v519, %s528
        %v530 = vpop.permute.xlu0 %529
        %s532 = sor.u32 256, 24
        %533 = vbcast.lane.b32.xlu0 %v519, %s532
        %v534 = vpop.permute.xlu0 %533
        %v535 = vmul.f32 %v243, %v522
        %v536 = vmul.f32 %v244, %v526
        %v537 = vmul.f32 %v245, %v530
        %v538 = vmul.f32 %v246, %v534
        %539 = vst.msk [vmem:[%s242] sm:$0xff] %vm247, %v535
        %540 = vst.msk [vmem:[%s242 + $0x8] sm:$0xff] %vm247, %v536
        %541 = vst.msk [vmem:[%s242 + $0x10] sm:$0xff] %vm247, %v537
        %542 = vst.msk [vmem:[%s242 + $0x18] sm:$0xff] %vm247, %v538
        %s543 = sand.u32 %s140, 1
        %s544 = scalar_lea.sflag [#allocation4], %s543
        %s545 = sand.u32 %s140, 1
        %s546 = smul.addr %s545, 32
        %s547 = scalar_lea.vmem [#allocation5], %s546
        // Predicated region
        $region45: #{tpu_custom_call.1} parent=39 // pred_check
          %p548 = pneg %p150
        $region46: #{tpu_custom_call.1} parent=39 // pred_check_branch
          %550 = sbr.rel (%p548) target = $region48
        $region47: #{tpu_custom_call.1} parent=39 // pred_region
          %s552 = ssub.s32 512, 512
          %553 = vsyncadd %s544, %s552
          %s554 = smul.addr %s22, 4
          %s555 = smul.addr %s554, 128
          %s556 = scalar_lea.hbm %s5, %s555
          %s557 = sshll.u32 %s547, 4
          %s558 = int_to_ptr.vmem [resolvable:$true] %s557
          %563 = dma.vmem_to_hbm [thread:$0]  %s558, 512, %s556, %s544, 128, 128, 8
        $region48: #{tpu_custom_call.1} parent=39 // pred_fallthru
          _
      $region40: #{tpu_custom_call.1} parent=5 // pred_fallthru
        _
      %p564 = scmp.le.s32.totalorder 2, %s17
      // Predicated region
      $region49: #{tpu_custom_call.1} parent=5 // pred_check
        %p565 = pneg %p564
      $region50: #{tpu_custom_call.1} parent=5 // pred_check_branch
        %567 = sbr.rel (%p565) target = $region52
      $region51: #{tpu_custom_call.1} parent=5 // pred_region
        %s568 = ssub.s32 %s17, 2
        // Predicated region
        $region53: #{tpu_custom_call.1} parent=51 // pred_check
          %p569 = pneg %p156
        $region54: #{tpu_custom_call.1} parent=51 // pred_check_branch
          %571 = sbr.rel (%p569) target = $region56
        $region55: #{tpu_custom_call.1} parent=51 // pred_region
          %s572 = sand.u32 %s141, 1
          %s573 = scalar_lea.sflag [#allocation4], %s572
          %s574 = sand.u32 %s141, 1
          %s575 = smul.addr %s574, 32
          %s576 = scalar_lea.vmem [#allocation5], %s575
          %577 = dma.done %s573, 512
        $region56: #{tpu_custom_call.1} parent=51 // pred_fallthru
          _
      $region52: #{tpu_custom_call.1} parent=5 // pred_fallthru
        _
    $region6: #{tpu_custom_call.1} parent=1 // loop_footer
      %s21 = sadd.s32 1, %s17
    $region7: #{tpu_custom_call.1} parent=1 // loop_footer_branch
      %16 = sbr.rel target = $region3
    $region8: #{tpu_custom_call.1} parent=1 // loop_exit
      _
    %578 = vsyncpa [#allocation3], 1
    %s579 = scalar_lea.sflag [#allocation3], 1
    %580 = vsyncpa %s579, 1
    %581 = vsyncpa [#allocation4], 1
    %s582 = scalar_lea.sflag [#allocation4], 1
    %583 = vsyncpa %s582, 1

</llo_original>
